<compile_context>
chip_gen: v7x
topology: tpu7x:2x2x1
jax: 0.10.0
libtpu: 0.0.40
codegen_flags: <defaults>
</compile_context>

<pallas_src>
import jax
import jax.numpy as jnp
from jax.experimental import pallas as pl
from jax.experimental.pallas import tpu as pltpu


# ---------------------------------------------------------------------------
# Kernel
# ---------------------------------------------------------------------------
def autoencoder_kernel(x_ref,
                       w1_ref, b1_ref, w2_ref, b2_ref, w34_ref, b34_ref,
                       w5_ref, b5_ref, w6_ref, b6_ref,
                       o_ref):
    """Batch-major MLP block: x (TB, 4) -> out (TB, 4).

    Weights arrive pre-transposed as (in, out) in bf16/f32; biases as (1, out)
    f32. Matmuls accumulate in f32 (preferred_element_type); bias+ReLU in f32.
    """
    dot_dt = w1_ref.dtype            # bf16 (perf default) or f32
    acc = jnp.float32

    h = x_ref[...].astype(dot_dt)                                           # (TB, 4)

    # encoder: Linear(4,128)+ReLU, Linear(128,64)+ReLU  (first layer on MXU)
    h = jnp.dot(h, w1_ref[...], preferred_element_type=acc) + b1_ref[...]
    h = jnp.maximum(h, 0.0)                                                 # (TB, 128)
    h = jnp.dot(h.astype(dot_dt), w2_ref[...], preferred_element_type=acc) + b2_ref[...]
    h = jnp.maximum(h, 0.0)                                                 # (TB, 64)

    # fused ReLU-free bottleneck Linear(64,2)->Linear(2,64), then decoder ReLU
    h = jnp.dot(h.astype(dot_dt), w34_ref[...], preferred_element_type=acc) + b34_ref[...]
    h = jnp.maximum(h, 0.0)                                                 # (TB, 64)

    # decoder tail: Linear(64,128)+ReLU, Linear(128,4)
    h = jnp.dot(h.astype(dot_dt), w5_ref[...], preferred_element_type=acc) + b5_ref[...]
    h = jnp.maximum(h, 0.0)                                                 # (TB, 128)
    h = jnp.dot(h.astype(dot_dt), w6_ref[...], preferred_element_type=acc) + b6_ref[...]

    o_ref[...] = h.astype(o_ref.dtype)                                      # (TB, 4)


# ---------------------------------------------------------------------------
# One-time weight preprocessing (hoisted out of the forward path)
# ---------------------------------------------------------------------------
def prepare_weights(params, use_bf16=True):
    """PyTorch layout in: W (out, in), b (out,).

    Returns a kernel-ready tuple: W^T as (in, out) in bf16/f32, biases as
    (1, out) f32, with the ReLU-free Linear(64,2)->Linear(2,64) bottleneck
    fused into a single exact 64x64 layer (removes the degenerate K=2 / N=2
    MXU calls).
    """
    w1, b1, w2, b2, w3, b3, w4, b4, w5, b5, w6, b6 = params
    w34 = w4 @ w3                       # (64, 64), exact (no ReLU between 3 and 4)
    b34 = w4 @ b3 + b4                  # (64,)
    dot_dt = jnp.bfloat16 if use_bf16 else jnp.float32

    def wt(w):                          # (out, in) -> (in, out), matmul dtype
        return jnp.asarray(w, jnp.float32).T.astype(dot_dt)

    def row(b):                         # (out,) -> (1, out), kept f32
        return jnp.asarray(b, jnp.float32).reshape(1, -1)

    return (wt(w1), row(b1), wt(w2), row(b2), wt(w34), row(b34),
            wt(w5), row(b5), wt(w6), row(b6))


# ---------------------------------------------------------------------------
# Forward wrapper
# ---------------------------------------------------------------------------
_MACS_PER_ROW = 4 * 128 + 128 * 64 + 64 * 64 + 64 * 128 + 128 * 4   # 21504


def _round_up(x, m):
    return ((x + m - 1) // m) * m


def _pick_tile_and_vmem(batch_size):
    """Chip-generation-aware batch tile + scoped-VMEM limit."""
    try:
        vmem_phys = int(pltpu.get_tpu_info().vmem_capacity_bytes)
    except Exception:
        vmem_phys = 64 * 1024 * 1024            # conservative: v7x per-TC VMEM
    # Raise the scoped-VMEM default (16 MiB v5e / 32 MiB v6e,v7x) but keep
    # headroom below physical VMEM.
    vmem_limit = min((vmem_phys * 3) // 4, 100 * 1024 * 1024)
    # Per-row VMEM estimate: double-buffered lane-padded (TB,4) in/out tiles
    # (~2 KiB/row) + live f32/bf16 activation slabs (~2 KiB/row).
    per_row = 4096
    fixed = 2 * 1024 * 1024                     # weights + internal scratch headroom
    tb_cap = max(1024, ((vmem_limit - fixed) // per_row) // 1024 * 1024)
    tb_cap = min(tb_cap, 8192)                  # grid overhead already <10% here
    tb = min(tb_cap, _round_up(batch_size, 8))
    # v7x-like parts (<=64 MiB/TC) have 2 TensorCores: ensure the "parallel"
    # batch axis has >= 2 grid steps when the batch is big enough to split.
    if vmem_phys <= 64 * 1024 * 1024 and batch_size > 2048 and batch_size <= tb:
        tb = max(1024, _round_up(-(-batch_size // 2), 8))
    return tb, vmem_limit


def autoencoder_forward(x, prepared_weights):
    """x: (B, 4). Returns (B, 4) float32. No wrapper-side transposes."""
    x = x.astype(jnp.float32)
    B = x.shape[0]
    weights = prepared_weights

    TB, vmem_limit = _pick_tile_and_vmem(B)
    B_pad = _round_up(B, TB)
    # Zero-pad only when needed; padded rows become nonzero after the bias adds
    # (harmless) and are sliced off below.
    x_pad = x if B_pad == B else jnp.zeros((B_pad, 4), jnp.float32).at[:B, :].set(x)

    weight_bytes = sum(int(w.size) * w.dtype.itemsize for w in weights)
    cost = pl.CostEstimate(
        flops=2 * _MACS_PER_ROW * B_pad,
        transcendentals=0,
        bytes_accessed=2 * B_pad * 4 * 4 + weight_bytes)

    grid = (B_pad // TB,)
    # x/out: 1-D batch grid, auto double-buffered. Weights/biases: constant
    # index_map -> DMA'd once, VMEM-resident across all grid steps.
    in_specs = [pl.BlockSpec((TB, 4), lambda i: (i, 0))] + [
        pl.BlockSpec(w.shape, lambda i: (0, 0)) for w in weights]
    out_specs = pl.BlockSpec((TB, 4), lambda i: (i, 0))

    out = pl.pallas_call(
        autoencoder_kernel,
        out_shape=jax.ShapeDtypeStruct((B_pad, 4), jnp.float32),
        grid=grid,
        in_specs=in_specs,
        out_specs=out_specs,
        compiler_params=pltpu.CompilerParams(
            dimension_semantics=("parallel",),
            vmem_limit_bytes=int(vmem_limit)),
        cost_estimate=cost,
    )(x_pad, *weights)

    return out[:B]


# ---------------------------------------------------------------------------
# Reference + init (PyTorch semantics)
# ---------------------------------------------------------------------------
def init_params(key):
    """Deterministic init matching PyTorch nn.Linear: W (out, in), b (out,)."""
    layer_dims = [(4, 128), (128, 64), (64, 2),    # encoder
                  (2, 64), (64, 128), (128, 4)]    # decoder
    params = []
    for i, (fan_in, fan_out) in enumerate(layer_dims):
        kw, kb = jax.random.split(jax.random.fold_in(key, i))
        bound = float(fan_in) ** -0.5
        w = jax.random.uniform(kw, (fan_out, fan_in), jnp.float32, -bound, bound)
        b = jax.random.uniform(kb, (fan_out,), jnp.float32, -bound, bound)
        params += [w, b]
    return params


def reference_forward(x, params):
    """Pure-JAX reference with PyTorch semantics (no fusion, f32)."""
    w1, b1, w2, b2, w3, b3, w4, b4, w5, b5, w6, b6 = params
    h = jnp.maximum(x @ w1.T + b1, 0.0)
    h = jnp.maximum(h @ w2.T + b2, 0.0)
    z = h @ w3.T + b3                       # 2-dim latent
    h = jnp.maximum(z @ w4.T + b4, 0.0)
    h = jnp.maximum(h @ w5.T + b5, 0.0)
    return h @ w6.T + b6


if __name__ == "__main__":
    key = jax.random.PRNGKey(0)
    params = init_params(key)

    B = 8
    x = jax.random.normal(jax.random.fold_in(key, 100), (B, 4), jnp.float32)

    ref = reference_forward(x, params)
    fwd = jax.jit(autoencoder_forward)

    # f32 matmul-operand path: matches the unfused reference at rounding level.
    w_f32 = prepare_weights(params, use_bf16=False)
    out_f32 = jax.block_until_ready(fwd(x, w_f32))
    assert out_f32.shape == (B, 4)
    assert jnp.allclose(out_f32, ref, atol=1e-3, rtol=1e-3)

    # bf16 matmul-operand path (perf default on v6e/v7x): ~1e-3..1e-2 rel error.
    w_bf16 = prepare_weights(params, use_bf16=True)
    out_bf16 = jax.block_until_ready(fwd(x, w_bf16))
    assert out_bf16.shape == (B, 4)
    assert jnp.allclose(out_bf16, ref, atol=5e-2, rtol=5e-2)

    print("KERNEL_OK")
</pallas_src>

<mosaic_0001>
module attributes {stable_mosaic.version = 11 : i64} {
  func.func @autoencoder_kernel(%arg0: i32, %arg1: memref<8x4xf32, #tpu.memory_space<vmem>>, %arg2: memref<4x128xf32, #tpu.memory_space<vmem>>, %arg3: memref<1x128xf32, #tpu.memory_space<vmem>>, %arg4: memref<128x64xf32, #tpu.memory_space<vmem>>, %arg5: memref<1x64xf32, #tpu.memory_space<vmem>>, %arg6: memref<64x64xf32, #tpu.memory_space<vmem>>, %arg7: memref<1x64xf32, #tpu.memory_space<vmem>>, %arg8: memref<64x128xf32, #tpu.memory_space<vmem>>, %arg9: memref<1x128xf32, #tpu.memory_space<vmem>>, %arg10: memref<128x4xf32, #tpu.memory_space<vmem>>, %arg11: memref<1x4xf32, #tpu.memory_space<vmem>>, %arg12: memref<8x4xf32, #tpu.memory_space<vmem>>) attributes {dimension_semantics = [#tpu.dimension_semantics<parallel>], iteration_bounds = array<i64: 1>, scalar_prefetch = 0 : i64, scratch_operands = 0 : i64, tpu.core_type = #tpu.core_type<tc>, window_params = [{transform_indices = @transform_0, window_bounds = array<i64: 8, 4>}, {pipeline_mode = #tpu.pipeline_mode<synchronous>, transform_indices = @transform_1, window_bounds = array<i64: 4, 128>}, {pipeline_mode = #tpu.pipeline_mode<synchronous>, transform_indices = @transform_2, window_bounds = array<i64: 1, 128>}, {pipeline_mode = #tpu.pipeline_mode<synchronous>, transform_indices = @transform_3, window_bounds = array<i64: 128, 64>}, {pipeline_mode = #tpu.pipeline_mode<synchronous>, transform_indices = @transform_4, window_bounds = array<i64: 1, 64>}, {pipeline_mode = #tpu.pipeline_mode<synchronous>, transform_indices = @transform_5, window_bounds = array<i64: 64, 64>}, {pipeline_mode = #tpu.pipeline_mode<synchronous>, transform_indices = @transform_6, window_bounds = array<i64: 1, 64>}, {pipeline_mode = #tpu.pipeline_mode<synchronous>, transform_indices = @transform_7, window_bounds = array<i64: 64, 128>}, {pipeline_mode = #tpu.pipeline_mode<synchronous>, transform_indices = @transform_8, window_bounds = array<i64: 1, 128>}, {pipeline_mode = #tpu.pipeline_mode<synchronous>, transform_indices = @transform_9, window_bounds = array<i64: 128, 4>}, {pipeline_mode = #tpu.pipeline_mode<synchronous>, transform_indices = @transform_10, window_bounds = array<i64: 1, 4>}, {transform_indices = @transform_11, window_bounds = array<i64: 8, 4>}]} {
    %c0 = arith.constant 0 : index
    %c0_0 = arith.constant 0 : index
    %0 = vector.load %arg1[%c0, %c0_0] : memref<8x4xf32, #tpu.memory_space<vmem>>, vector<8x4xf32>
    %c0_1 = arith.constant 0 : index
    %c0_2 = arith.constant 0 : index
    %1 = vector.load %arg2[%c0_1, %c0_2] : memref<4x128xf32, #tpu.memory_space<vmem>>, vector<4x128xf32>
    %cst = arith.constant dense<0.000000e+00> : vector<8x128xf32>
    %2 = tpu.matmul %0, %1, %cst {dimension_numbers = #tpu.dot_dimension_numbers<[1], [0], [0], [1], [0, 0, 1, 1], [], []>} : vector<8x4xf32>, vector<4x128xf32>, vector<8x128xf32> -> vector<8x128xf32>
    %c0_3 = arith.constant 0 : index
    %c0_4 = arith.constant 0 : index
    %3 = vector.load %arg3[%c0_3, %c0_4] : memref<1x128xf32, #tpu.memory_space<vmem>>, vector<1x128xf32>
    %4 = vector.broadcast %3 : vector<1x128xf32> to vector<8x128xf32>
    %5 = arith.addf %2, %4 : vector<8x128xf32>
    %cst_5 = arith.constant 0.000000e+00 : f32
    %6 = vector.broadcast %cst_5 : f32 to vector<8x128xf32>
    %7 = arith.maximumf %5, %6 : vector<8x128xf32>
    %c0_6 = arith.constant 0 : index
    %c0_7 = arith.constant 0 : index
    %8 = vector.load %arg4[%c0_6, %c0_7] : memref<128x64xf32, #tpu.memory_space<vmem>>, vector<128x64xf32>
    %cst_8 = arith.constant dense<0.000000e+00> : vector<8x64xf32>
    %9 = tpu.matmul %7, %8, %cst_8 {dimension_numbers = #tpu.dot_dimension_numbers<[1], [0], [0], [1], [0, 0, 1, 1], [], []>} : vector<8x128xf32>, vector<128x64xf32>, vector<8x64xf32> -> vector<8x64xf32>
    %c0_9 = arith.constant 0 : index
    %c0_10 = arith.constant 0 : index
    %10 = vector.load %arg5[%c0_9, %c0_10] : memref<1x64xf32, #tpu.memory_space<vmem>>, vector<1x64xf32>
    %11 = vector.broadcast %10 : vector<1x64xf32> to vector<8x64xf32>
    %12 = arith.addf %9, %11 : vector<8x64xf32>
    %cst_11 = arith.constant 0.000000e+00 : f32
    %13 = vector.broadcast %cst_11 : f32 to vector<8x64xf32>
    %14 = arith.maximumf %12, %13 : vector<8x64xf32>
    %c0_12 = arith.constant 0 : index
    %c0_13 = arith.constant 0 : index
    %15 = vector.load %arg6[%c0_12, %c0_13] : memref<64x64xf32, #tpu.memory_space<vmem>>, vector<64x64xf32>
    %cst_14 = arith.constant dense<0.000000e+00> : vector<8x64xf32>
    %16 = tpu.matmul %14, %15, %cst_14 {dimension_numbers = #tpu.dot_dimension_numbers<[1], [0], [0], [1], [0, 0, 1, 1], [], []>} : vector<8x64xf32>, vector<64x64xf32>, vector<8x64xf32> -> vector<8x64xf32>
    %c0_15 = arith.constant 0 : index
    %c0_16 = arith.constant 0 : index
    %17 = vector.load %arg7[%c0_15, %c0_16] : memref<1x64xf32, #tpu.memory_space<vmem>>, vector<1x64xf32>
    %18 = vector.broadcast %17 : vector<1x64xf32> to vector<8x64xf32>
    %19 = arith.addf %16, %18 : vector<8x64xf32>
    %cst_17 = arith.constant 0.000000e+00 : f32
    %20 = vector.broadcast %cst_17 : f32 to vector<8x64xf32>
    %21 = arith.maximumf %19, %20 : vector<8x64xf32>
    %c0_18 = arith.constant 0 : index
    %c0_19 = arith.constant 0 : index
    %22 = vector.load %arg8[%c0_18, %c0_19] : memref<64x128xf32, #tpu.memory_space<vmem>>, vector<64x128xf32>
    %cst_20 = arith.constant dense<0.000000e+00> : vector<8x128xf32>
    %23 = tpu.matmul %21, %22, %cst_20 {dimension_numbers = #tpu.dot_dimension_numbers<[1], [0], [0], [1], [0, 0, 1, 1], [], []>} : vector<8x64xf32>, vector<64x128xf32>, vector<8x128xf32> -> vector<8x128xf32>
    %c0_21 = arith.constant 0 : index
    %c0_22 = arith.constant 0 : index
    %24 = vector.load %arg9[%c0_21, %c0_22] : memref<1x128xf32, #tpu.memory_space<vmem>>, vector<1x128xf32>
    %25 = vector.broadcast %24 : vector<1x128xf32> to vector<8x128xf32>
    %26 = arith.addf %23, %25 : vector<8x128xf32>
    %cst_23 = arith.constant 0.000000e+00 : f32
    %27 = vector.broadcast %cst_23 : f32 to vector<8x128xf32>
    %28 = arith.maximumf %26, %27 : vector<8x128xf32>
    %c0_24 = arith.constant 0 : index
    %c0_25 = arith.constant 0 : index
    %29 = vector.load %arg10[%c0_24, %c0_25] : memref<128x4xf32, #tpu.memory_space<vmem>>, vector<128x4xf32>
    %cst_26 = arith.constant dense<0.000000e+00> : vector<8x4xf32>
    %30 = tpu.matmul %28, %29, %cst_26 {dimension_numbers = #tpu.dot_dimension_numbers<[1], [0], [0], [1], [0, 0, 1, 1], [], []>} : vector<8x128xf32>, vector<128x4xf32>, vector<8x4xf32> -> vector<8x4xf32>
    %c0_27 = arith.constant 0 : index
    %c0_28 = arith.constant 0 : index
    %31 = vector.load %arg11[%c0_27, %c0_28] : memref<1x4xf32, #tpu.memory_space<vmem>>, vector<1x4xf32>
    %32 = vector.broadcast %31 : vector<1x4xf32> to vector<8x4xf32>
    %33 = arith.addf %30, %32 : vector<8x4xf32>
    %c0_29 = arith.constant 0 : index
    %c0_30 = arith.constant 0 : index
    %34 = vector.load %arg12[%c0_29, %c0_30] : memref<8x4xf32, #tpu.memory_space<vmem>>, vector<8x4xf32>
    tpu.vector_store %arg12[%c0_29, %c0_30], %33 {strides = array<i32>} : memref<8x4xf32, #tpu.memory_space<vmem>>, vector<8x4xf32>,
    return
  }
  func.func @transform_0(%arg0: i32) -> (i32, i32) {
    %c0_i32 = arith.constant 0 : i32
    %c0_i32_0 = arith.constant 0 : i32
    return %arg0, %c0_i32 : i32, i32
  }
  func.func @transform_1(%arg0: i32) -> (i32, i32) {
    %c0_i32 = arith.constant 0 : i32
    %c0_i32_0 = arith.constant 0 : i32
    %c0_i32_1 = arith.constant 0 : i32
    return %c0_i32, %c0_i32_0 : i32, i32
  }
  func.func @transform_2(%arg0: i32) -> (i32, i32) {
    %c0_i32 = arith.constant 0 : i32
    %c0_i32_0 = arith.constant 0 : i32
    %c0_i32_1 = arith.constant 0 : i32
    return %c0_i32, %c0_i32_0 : i32, i32
  }
  func.func @transform_3(%arg0: i32) -> (i32, i32) {
    %c0_i32 = arith.constant 0 : i32
    %c0_i32_0 = arith.constant 0 : i32
    %c0_i32_1 = arith.constant 0 : i32
    return %c0_i32, %c0_i32_0 : i32, i32
  }
  func.func @transform_4(%arg0: i32) -> (i32, i32) {
    %c0_i32 = arith.constant 0 : i32
    %c0_i32_0 = arith.constant 0 : i32
    %c0_i32_1 = arith.constant 0 : i32
    return %c0_i32, %c0_i32_0 : i32, i32
  }
  func.func @transform_5(%arg0: i32) -> (i32, i32) {
    %c0_i32 = arith.constant 0 : i32
    %c0_i32_0 = arith.constant 0 : i32
    %c0_i32_1 = arith.constant 0 : i32
    return %c0_i32, %c0_i32_0 : i32, i32
  }
  func.func @transform_6(%arg0: i32) -> (i32, i32) {
    %c0_i32 = arith.constant 0 : i32
    %c0_i32_0 = arith.constant 0 : i32
    %c0_i32_1 = arith.constant 0 : i32
    return %c0_i32, %c0_i32_0 : i32, i32
  }
  func.func @transform_7(%arg0: i32) -> (i32, i32) {
    %c0_i32 = arith.constant 0 : i32
    %c0_i32_0 = arith.constant 0 : i32
    %c0_i32_1 = arith.constant 0 : i32
    return %c0_i32, %c0_i32_0 : i32, i32
  }
  func.func @transform_8(%arg0: i32) -> (i32, i32) {
    %c0_i32 = arith.constant 0 : i32
    %c0_i32_0 = arith.constant 0 : i32
    %c0_i32_1 = arith.constant 0 : i32
    return %c0_i32, %c0_i32_0 : i32, i32
  }
  func.func @transform_9(%arg0: i32) -> (i32, i32) {
    %c0_i32 = arith.constant 0 : i32
    %c0_i32_0 = arith.constant 0 : i32
    %c0_i32_1 = arith.constant 0 : i32
    return %c0_i32, %c0_i32_0 : i32, i32
  }
  func.func @transform_10(%arg0: i32) -> (i32, i32) {
    %c0_i32 = arith.constant 0 : i32
    %c0_i32_0 = arith.constant 0 : i32
    %c0_i32_1 = arith.constant 0 : i32
    return %c0_i32, %c0_i32_0 : i32, i32
  }
  func.func @transform_11(%arg0: i32) -> (i32, i32) {
    %c0_i32 = arith.constant 0 : i32
    %c0_i32_0 = arith.constant 0 : i32
    return %arg0, %c0_i32 : i32, i32
  }
}

</mosaic_0001>

<llo_original>
// kernel: autoencoder_forward.1
$region0: #{autoencoder_forward.1}
  #allocation0 [shape = 'u32[]', space=smem, size = 0x4, offset = 0x4, fixed_abs, tag = 'smem constant byte address 0x4 - core index']
  #allocation1 [shape = 'u32[144,128]{1,0:T(1,128)}', space=vmem, size = 0x12000, scoped, tag = 'internal scratch']
  %s0 = inlined_call_operand.vmem [shape: f32[8,4], index: 0, kind: input, shape index: {}]
  %s1 = inlined_call_operand.vmem [shape: f32[4,128], index: 1, kind: input, shape index: {}]
  %s2 = inlined_call_operand.vmem [shape: f32[1,128], index: 2, kind: input, shape index: {}]
  %s3 = inlined_call_operand.vmem [shape: f32[128,64], index: 3, kind: input, shape index: {}]
  %s4 = inlined_call_operand.vmem [shape: f32[1,64], index: 4, kind: input, shape index: {}]
  %s5 = inlined_call_operand.vmem [shape: f32[64,64], index: 5, kind: input, shape index: {}]
  %s6 = inlined_call_operand.vmem [shape: f32[1,64], index: 6, kind: input, shape index: {}]
  %s7 = inlined_call_operand.vmem [shape: f32[64,128], index: 7, kind: input, shape index: {}]
  %s8 = inlined_call_operand.vmem [shape: f32[1,128], index: 8, kind: input, shape index: {}]
  %s9 = inlined_call_operand.vmem [shape: f32[128,4], index: 9, kind: input, shape index: {}]
  %s10 = inlined_call_operand.vmem [shape: f32[1,4], index: 10, kind: input, shape index: {}]
  %s11 = inlined_call_operand.vmem [shape: f32[8,4], index: 11, kind: output, shape index: {}]
  %s12 = sld [smem:[#allocation0]]
  $region54: #{autoencoder_forward.1} parent=0
    _
  %s14 = ssub.s32 1, %s12
  %s15 = scalar_select 0, %s14, %s12
  // Predicated region
  $region2: #{autoencoder_forward.1} parent=0 // pred_check
    _
  $region3: #{autoencoder_forward.1} parent=0 // pred_check_branch
    %17 = sbr.rel (0) target = $region5
  $region4: #{autoencoder_forward.1} parent=0 // pred_region
    _
  $region5: #{autoencoder_forward.1} parent=0 // pred_fallthru
    _
  // Predicated region
  $region6: #{autoencoder_forward.1} parent=0 // pred_check
    _
  $region7: #{autoencoder_forward.1} parent=0 // pred_check_branch
    %19 = sbr.rel (0) target = $region9
  $region8: #{autoencoder_forward.1} parent=0 // pred_region
    _
  $region9: #{autoencoder_forward.1} parent=0 // pred_fallthru
    _
  // Predicated region
  $region10: #{autoencoder_forward.1} parent=0 // pred_check
    _
  $region11: #{autoencoder_forward.1} parent=0 // pred_check_branch
    %21 = sbr.rel (0) target = $region13
  $region12: #{autoencoder_forward.1} parent=0 // pred_region
    _
  $region13: #{autoencoder_forward.1} parent=0 // pred_fallthru
    _
  // Predicated region
  $region14: #{autoencoder_forward.1} parent=0 // pred_check
    _
  $region15: #{autoencoder_forward.1} parent=0 // pred_check_branch
    %23 = sbr.rel (0) target = $region17
  $region16: #{autoencoder_forward.1} parent=0 // pred_region
    _
  $region17: #{autoencoder_forward.1} parent=0 // pred_fallthru
    _
  // Predicated region
  $region18: #{autoencoder_forward.1} parent=0 // pred_check
    _
  $region19: #{autoencoder_forward.1} parent=0 // pred_check_branch
    %25 = sbr.rel (0) target = $region21
  $region20: #{autoencoder_forward.1} parent=0 // pred_region
    _
  $region21: #{autoencoder_forward.1} parent=0 // pred_fallthru
    _
  // Predicated region
  $region22: #{autoencoder_forward.1} parent=0 // pred_check
    _
  $region23: #{autoencoder_forward.1} parent=0 // pred_check_branch
    %27 = sbr.rel (0) target = $region25
  $region24: #{autoencoder_forward.1} parent=0 // pred_region
    _
  $region25: #{autoencoder_forward.1} parent=0 // pred_fallthru
    _
  // Predicated region
  $region26: #{autoencoder_forward.1} parent=0 // pred_check
    _
  $region27: #{autoencoder_forward.1} parent=0 // pred_check_branch
    %29 = sbr.rel (0) target = $region29
  $region28: #{autoencoder_forward.1} parent=0 // pred_region
    _
  $region29: #{autoencoder_forward.1} parent=0 // pred_fallthru
    _
  // Predicated region
  $region30: #{autoencoder_forward.1} parent=0 // pred_check
    _
  $region31: #{autoencoder_forward.1} parent=0 // pred_check_branch
    %31 = sbr.rel (0) target = $region33
  $region32: #{autoencoder_forward.1} parent=0 // pred_region
    _
  $region33: #{autoencoder_forward.1} parent=0 // pred_fallthru
    _
  // Predicated region
  $region34: #{autoencoder_forward.1} parent=0 // pred_check
    _
  $region35: #{autoencoder_forward.1} parent=0 // pred_check_branch
    %33 = sbr.rel (0) target = $region37
  $region36: #{autoencoder_forward.1} parent=0 // pred_region
    _
  $region37: #{autoencoder_forward.1} parent=0 // pred_fallthru
    _
  // Predicated region
  $region38: #{autoencoder_forward.1} parent=0 // pred_check
    _
  $region39: #{autoencoder_forward.1} parent=0 // pred_check_branch
    %35 = sbr.rel (0) target = $region41
  $region40: #{autoencoder_forward.1} parent=0 // pred_region
    _
  $region41: #{autoencoder_forward.1} parent=0 // pred_fallthru
    _
  // Predicated region
  $region42: #{autoencoder_forward.1} parent=0 // pred_check
    _
  $region43: #{autoencoder_forward.1} parent=0 // pred_check_branch
    %37 = sbr.rel (0) target = $region45
  $region44: #{autoencoder_forward.1} parent=0 // pred_region
    _
  $region45: #{autoencoder_forward.1} parent=0 // pred_fallthru
    _
  %v38 = vld [vmem:[%s0] sm:$0xff]
  %v39 = vld [vmem:[%s1] sm:$0xf]
  %v40 = vld [vmem:[%s2] sm:$0x1]
  %v42 = vlaneseq
  %v43 = vshrl.u32 %v42, 7
  %v44 = vsub.s32 0, %v43
  %v45 = vrot.slane %v40, %v44
  %vm47 = vcmask 31744
  %v49 = vsel %vm47, %v38, 0
  %vm51 = vcmask 1043456
  %v53 = vsel %vm51, %v39, 0
  %55 = vmatprep.subr.mxu0 0.0
  %56 = vmatpush1.msra.mxu0 %v53
  %57 = vmatprep.subr.mxu0 0.0
  %58 = vmatpush1.msra.mxu0 0.0
  %59 = vmatprep.subr.mxu0 0.0
  %60 = vmatpush1.msra.mxu0 0.0
  %61 = vmatprep.subr.mxu0 0.0
  %62 = vmatpush1.msra.mxu0 0.0
  %63 = vmatprep.subr.mxu0 0.0
  %64 = vmatpush1.msra.mxu0 0.0
  %65 = vmatprep.subr.mxu0 0.0
  %66 = vmatpush1.msra.mxu0 0.0
  %67 = vmatprep.subr.mxu0 0.0
  %68 = vmatpush1.msra.mxu0 0.0
  %69 = vmatprep.subr.mxu0 0.0
  %70 = vmatpush1.msra.mxu0 0.0
  %71 = vmatprep.subr.mxu0 0.0
  %72 = vmatpush1.msra.mxu0 0.0
  %73 = vmatprep.subr.mxu0 0.0
  %74 = vmatpush1.msra.mxu0 0.0
  %75 = vmatprep.subr.mxu0 0.0
  %76 = vmatpush1.msra.mxu0 0.0
  %77 = vmatprep.subr.mxu0 0.0
  %78 = vmatpush1.msra.mxu0 0.0
  %79 = vmatprep.subr.mxu0 0.0
  %80 = vmatpush1.msra.mxu0 0.0
  %81 = vmatprep.subr.mxu0 0.0
  %82 = vmatpush1.msra.mxu0 0.0
  %83 = vmatprep.subr.mxu0 0.0
  %84 = vmatpush1.msra.mxu0 0.0
  %85 = vmatprep.subr.mxu0 0.0
  %86 = vmatpush1.msra.mxu0 0.0
  %87 = vmatprep.subr.mxu0 0.0
  %88 = vmatpush1.msra.mxu0 0.0
  %89 = vmatprep.subr.mxu0 0.0
  %90 = vmatpush1.msra.mxu0 0.0
  %91 = vmatprep.subr.mxu0 0.0
  %92 = vmatpush1.msra.mxu0 0.0
  %93 = vmatprep.subr.mxu0 0.0
  %94 = vmatpush1.msra.mxu0 0.0
  %95 = vmatprep.subr.mxu0 0.0
  %96 = vmatpush1.msra.mxu0 0.0
  %97 = vmatprep.subr.mxu0 0.0
  %98 = vmatpush1.msra.mxu0 0.0
  %99 = vmatprep.subr.mxu0 0.0
  %100 = vmatpush1.msra.mxu0 0.0
  %101 = vmatprep.subr.mxu0 0.0
  %102 = vmatpush1.msra.mxu0 0.0
  %103 = vmatprep.subr.mxu0 0.0
  %104 = vmatpush1.msra.mxu0 0.0
  %105 = vmatprep.subr.mxu0 0.0
  %106 = vmatpush1.msra.mxu0 0.0
  %107 = vmatprep.subr.mxu0 0.0
  %108 = vmatpush1.msra.mxu0 0.0
  %109 = vmatprep.subr.mxu0 0.0
  %110 = vmatpush1.msra.mxu0 0.0
  %111 = vmatprep.subr.mxu0 0.0
  %112 = vmatpush1.msra.mxu0 0.0
  %113 = vmatprep.subr.mxu0 0.0
  %114 = vmatpush1.msra.mxu0 0.0
  %115 = vmatprep.subr.mxu0 0.0
  %116 = vmatpush1.msra.mxu0 0.0
  %117 = vmatprep.subr.mxu0 0.0
  %118 = vmatpush1.msra.mxu0 0.0
  %119 = vmatprep.mubr.f32.mxu0 0.0
  %120 = vmatmul.mubr.f32.gmra.mrb[0].mxu0 %v49
  %v121 = vpop.f32.mrb[0].mxu0
  %v122 = vadd.f32 %v45, %v121
  %v123 = vpop.f32.mrb[0].mxu0
  %124 = vdwg.mxu0
  %v125 = vmax.f32 %v122, 0.0
  %v126 = vld [vmem:[%s3] sm:$0xff]
  %v127 = vld [vmem:[%s3 + $0x8] sm:$0xff]
  %v128 = vld [vmem:[%s3 + $0x10] sm:$0xff]
  %v129 = vld [vmem:[%s3 + $0x18] sm:$0xff]
  %v130 = vld [vmem:[%s3 + $0x20] sm:$0xff]
  %v131 = vld [vmem:[%s3 + $0x28] sm:$0xff]
  %v132 = vld [vmem:[%s3 + $0x30] sm:$0xff]
  %v133 = vld [vmem:[%s3 + $0x38] sm:$0xff]
  %v134 = vld [vmem:[%s3 + $0x40] sm:$0xff]
  %v135 = vld [vmem:[%s3 + $0x48] sm:$0xff]
  %v136 = vld [vmem:[%s3 + $0x50] sm:$0xff]
  %v137 = vld [vmem:[%s3 + $0x58] sm:$0xff]
  %v138 = vld [vmem:[%s3 + $0x60] sm:$0xff]
  %v139 = vld [vmem:[%s3 + $0x68] sm:$0xff]
  %v140 = vld [vmem:[%s3 + $0x70] sm:$0xff]
  %v141 = vld [vmem:[%s3 + $0x78] sm:$0xff]
  %v142 = vld [vmem:[%s4] sm:$0x1]
  %v144 = vlaneseq
  %v145 = vshrl.u32 %v144, 7
  %v146 = vsub.s32 0, %v145
  %v147 = vrot.slane %v142, %v146
  %149 = vmatprep.subr.mxu0 0.0
  %150 = vmatpush1.msra.mxu0 %v126
  %151 = vmatprep.subr.mxu0 0.0
  %152 = vmatpush1.msra.mxu0 %v127
  %153 = vmatprep.subr.mxu0 0.0
  %154 = vmatpush1.msra.mxu0 %v128
  %155 = vmatprep.subr.mxu0 0.0
  %156 = vmatpush1.msra.mxu0 %v129
  %157 = vmatprep.subr.mxu0 0.0
  %158 = vmatpush1.msra.mxu0 %v130
  %159 = vmatprep.subr.mxu0 0.0
  %160 = vmatpush1.msra.mxu0 %v131
  %161 = vmatprep.subr.mxu0 0.0
  %162 = vmatpush1.msra.mxu0 %v132
  %163 = vmatprep.subr.mxu0 0.0
  %164 = vmatpush1.msra.mxu0 %v133
  %165 = vmatprep.subr.mxu0 0.0
  %166 = vmatpush1.msra.mxu0 %v134
  %167 = vmatprep.subr.mxu0 0.0
  %168 = vmatpush1.msra.mxu0 %v135
  %169 = vmatprep.subr.mxu0 0.0
  %170 = vmatpush1.msra.mxu0 %v136
  %171 = vmatprep.subr.mxu0 0.0
  %172 = vmatpush1.msra.mxu0 %v137
  %173 = vmatprep.subr.mxu0 0.0
  %174 = vmatpush1.msra.mxu0 %v138
  %175 = vmatprep.subr.mxu0 0.0
  %176 = vmatpush1.msra.mxu0 %v139
  %177 = vmatprep.subr.mxu0 0.0
  %178 = vmatpush1.msra.mxu0 %v140
  %179 = vmatprep.subr.mxu0 0.0
  %180 = vmatpush1.msra.mxu0 %v141
  %181 = vmatprep.subr.mxu0 0.0
  %182 = vmatpush1.msra.mxu0 0.0
  %183 = vmatprep.subr.mxu0 0.0
  %184 = vmatpush1.msra.mxu0 0.0
  %185 = vmatprep.subr.mxu0 0.0
  %186 = vmatpush1.msra.mxu0 0.0
  %187 = vmatprep.subr.mxu0 0.0
  %188 = vmatpush1.msra.mxu0 0.0
  %189 = vmatprep.subr.mxu0 0.0
  %190 = vmatpush1.msra.mxu0 0.0
  %191 = vmatprep.subr.mxu0 0.0
  %192 = vmatpush1.msra.mxu0 0.0
  %193 = vmatprep.subr.mxu0 0.0
  %194 = vmatpush1.msra.mxu0 0.0
  %195 = vmatprep.subr.mxu0 0.0
  %196 = vmatpush1.msra.mxu0 0.0
  %197 = vmatprep.subr.mxu0 0.0
  %198 = vmatpush1.msra.mxu0 0.0
  %199 = vmatprep.subr.mxu0 0.0
  %200 = vmatpush1.msra.mxu0 0.0
  %201 = vmatprep.subr.mxu0 0.0
  %202 = vmatpush1.msra.mxu0 0.0
  %203 = vmatprep.subr.mxu0 0.0
  %204 = vmatpush1.msra.mxu0 0.0
  %205 = vmatprep.subr.mxu0 0.0
  %206 = vmatpush1.msra.mxu0 0.0
  %207 = vmatprep.subr.mxu0 0.0
  %208 = vmatpush1.msra.mxu0 0.0
  %209 = vmatprep.subr.mxu0 0.0
  %210 = vmatpush1.msra.mxu0 0.0
  %211 = vmatprep.subr.mxu0 0.0
  %212 = vmatpush1.msra.mxu0 0.0
  %213 = vmatprep.mubr.f32.mxu0 0.0
  %214 = vmatmul.mubr.f32.gmra.mrb[0].mxu0 %v125
  %v215 = vpop.f32.mrb[0].mxu0
  %v216 = vadd.f32 %v147, %v215
  %v217 = vpop.f32.mrb[0].mxu0
  %218 = vdwg.mxu0
  %v219 = vmax.f32 %v216, 0.0
  %v220 = vld [vmem:[%s5] sm:$0xff]
  %v221 = vld [vmem:[%s5 + $0x8] sm:$0xff]
  %v222 = vld [vmem:[%s5 + $0x10] sm:$0xff]
  %v223 = vld [vmem:[%s5 + $0x18] sm:$0xff]
  %v224 = vld [vmem:[%s5 + $0x20] sm:$0xff]
  %v225 = vld [vmem:[%s5 + $0x28] sm:$0xff]
  %v226 = vld [vmem:[%s5 + $0x30] sm:$0xff]
  %v227 = vld [vmem:[%s5 + $0x38] sm:$0xff]
  %v228 = vld [vmem:[%s6] sm:$0x1]
  %v230 = vlaneseq
  %v231 = vshrl.u32 %v230, 7
  %v232 = vsub.s32 0, %v231
  %v233 = vrot.slane %v228, %v232
  %vm235 = vcmask 523264
  %v237 = vsel %vm235, %v219, 0
  %239 = vmatprep.subr.mxu0 0.0
  %240 = vmatpush1.msra.mxu0 %v220
  %241 = vmatprep.subr.mxu0 0.0
  %242 = vmatpush1.msra.mxu0 %v221
  %243 = vmatprep.subr.mxu0 0.0
  %244 = vmatpush1.msra.mxu0 %v222
  %245 = vmatprep.subr.mxu0 0.0
  %246 = vmatpush1.msra.mxu0 %v223
  %247 = vmatprep.subr.mxu0 0.0
  %248 = vmatpush1.msra.mxu0 %v224
  %249 = vmatprep.subr.mxu0 0.0
  %250 = vmatpush1.msra.mxu0 %v225
  %251 = vmatprep.subr.mxu0 0.0
  %252 = vmatpush1.msra.mxu0 %v226
  %253 = vmatprep.subr.mxu0 0.0
  %254 = vmatpush1.msra.mxu0 %v227
  %255 = vmatprep.subr.mxu0 0.0
  %256 = vmatpush1.msra.mxu0 0.0
  %257 = vmatprep.subr.mxu0 0.0
  %258 = vmatpush1.msra.mxu0 0.0
  %259 = vmatprep.subr.mxu0 0.0
  %260 = vmatpush1.msra.mxu0 0.0
  %261 = vmatprep.subr.mxu0 0.0
  %262 = vmatpush1.msra.mxu0 0.0
  %263 = vmatprep.subr.mxu0 0.0
  %264 = vmatpush1.msra.mxu0 0.0
  %265 = vmatprep.subr.mxu0 0.0
  %266 = vmatpush1.msra.mxu0 0.0
  %267 = vmatprep.subr.mxu0 0.0
  %268 = vmatpush1.msra.mxu0 0.0
  %269 = vmatprep.subr.mxu0 0.0
  %270 = vmatpush1.msra.mxu0 0.0
  %271 = vmatprep.subr.mxu0 0.0
  %272 = vmatpush1.msra.mxu0 0.0
  %273 = vmatprep.subr.mxu0 0.0
  %274 = vmatpush1.msra.mxu0 0.0
  %275 = vmatprep.subr.mxu0 0.0
  %276 = vmatpush1.msra.mxu0 0.0
  %277 = vmatprep.subr.mxu0 0.0
  %278 = vmatpush1.msra.mxu0 0.0
  %279 = vmatprep.subr.mxu0 0.0
  %280 = vmatpush1.msra.mxu0 0.0
  %281 = vmatprep.subr.mxu0 0.0
  %282 = vmatpush1.msra.mxu0 0.0
  %283 = vmatprep.subr.mxu0 0.0
  %284 = vmatpush1.msra.mxu0 0.0
  %285 = vmatprep.subr.mxu0 0.0
  %286 = vmatpush1.msra.mxu0 0.0
  %287 = vmatprep.subr.mxu0 0.0
  %288 = vmatpush1.msra.mxu0 0.0
  %289 = vmatprep.subr.mxu0 0.0
  %290 = vmatpush1.msra.mxu0 0.0
  %291 = vmatprep.subr.mxu0 0.0
  %292 = vmatpush1.msra.mxu0 0.0
  %293 = vmatprep.subr.mxu0 0.0
  %294 = vmatpush1.msra.mxu0 0.0
  %295 = vmatprep.subr.mxu0 0.0
  %296 = vmatpush1.msra.mxu0 0.0
  %297 = vmatprep.subr.mxu0 0.0
  %298 = vmatpush1.msra.mxu0 0.0
  %299 = vmatprep.subr.mxu0 0.0
  %300 = vmatpush1.msra.mxu0 0.0
  %301 = vmatprep.subr.mxu0 0.0
  %302 = vmatpush1.msra.mxu0 0.0
  %303 = vmatprep.mubr.f32.mxu0 0.0
  %304 = vmatmul.mubr.f32.gmra.mrb[0].mxu0 %v237
  %v305 = vpop.f32.mrb[0].mxu0
  %v306 = vadd.f32 %v233, %v305
  %v307 = vpop.f32.mrb[0].mxu0
  %308 = vdwg.mxu0
  %v309 = vmax.f32 %v306, 0.0
  %v310 = vld [vmem:[%s7] sm:$0xff]
  %v311 = vld [vmem:[%s7 + $0x8] sm:$0xff]
  %v312 = vld [vmem:[%s7 + $0x10] sm:$0xff]
  %v313 = vld [vmem:[%s7 + $0x18] sm:$0xff]
  %v314 = vld [vmem:[%s7 + $0x20] sm:$0xff]
  %v315 = vld [vmem:[%s7 + $0x28] sm:$0xff]
  %v316 = vld [vmem:[%s7 + $0x30] sm:$0xff]
  %v317 = vld [vmem:[%s7 + $0x38] sm:$0xff]
  %v318 = vld [vmem:[%s8] sm:$0x1]
  %v320 = vlaneseq
  %v321 = vshrl.u32 %v320, 7
  %v322 = vsub.s32 0, %v321
  %v323 = vrot.slane %v318, %v322
  %v326 = vsel %vm235, %v309, 0
  %328 = vmatprep.subr.mxu0 0.0
  %329 = vmatpush1.msra.mxu0 %v310
  %330 = vmatprep.subr.mxu0 0.0
  %331 = vmatpush1.msra.mxu0 %v311
  %332 = vmatprep.subr.mxu0 0.0
  %333 = vmatpush1.msra.mxu0 %v312
  %334 = vmatprep.subr.mxu0 0.0
  %335 = vmatpush1.msra.mxu0 %v313
  %336 = vmatprep.subr.mxu0 0.0
  %337 = vmatpush1.msra.mxu0 %v314
  %338 = vmatprep.subr.mxu0 0.0
  %339 = vmatpush1.msra.mxu0 %v315
  %340 = vmatprep.subr.mxu0 0.0
  %341 = vmatpush1.msra.mxu0 %v316
  %342 = vmatprep.subr.mxu0 0.0
  %343 = vmatpush1.msra.mxu0 %v317
  %344 = vmatprep.subr.mxu0 0.0
  %345 = vmatpush1.msra.mxu0 0.0
  %346 = vmatprep.subr.mxu0 0.0
  %347 = vmatpush1.msra.mxu0 0.0
  %348 = vmatprep.subr.mxu0 0.0
  %349 = vmatpush1.msra.mxu0 0.0
  %350 = vmatprep.subr.mxu0 0.0
  %351 = vmatpush1.msra.mxu0 0.0
  %352 = vmatprep.subr.mxu0 0.0
  %353 = vmatpush1.msra.mxu0 0.0
  %354 = vmatprep.subr.mxu0 0.0
  %355 = vmatpush1.msra.mxu0 0.0
  %356 = vmatprep.subr.mxu0 0.0
  %357 = vmatpush1.msra.mxu0 0.0
  %358 = vmatprep.subr.mxu0 0.0
  %359 = vmatpush1.msra.mxu0 0.0
  %360 = vmatprep.subr.mxu0 0.0
  %361 = vmatpush1.msra.mxu0 0.0
  %362 = vmatprep.subr.mxu0 0.0
  %363 = vmatpush1.msra.mxu0 0.0
  %364 = vmatprep.subr.mxu0 0.0
  %365 = vmatpush1.msra.mxu0 0.0
  %366 = vmatprep.subr.mxu0 0.0
  %367 = vmatpush1.msra.mxu0 0.0
  %368 = vmatprep.subr.mxu0 0.0
  %369 = vmatpush1.msra.mxu0 0.0
  %370 = vmatprep.subr.mxu0 0.0
  %371 = vmatpush1.msra.mxu0 0.0
  %372 = vmatprep.subr.mxu0 0.0
  %373 = vmatpush1.msra.mxu0 0.0
  %374 = vmatprep.subr.mxu0 0.0
  %375 = vmatpush1.msra.mxu0 0.0
  %376 = vmatprep.subr.mxu0 0.0
  %377 = vmatpush1.msra.mxu0 0.0
  %378 = vmatprep.subr.mxu0 0.0
  %379 = vmatpush1.msra.mxu0 0.0
  %380 = vmatprep.subr.mxu0 0.0
  %381 = vmatpush1.msra.mxu0 0.0
  %382 = vmatprep.subr.mxu0 0.0
  %383 = vmatpush1.msra.mxu0 0.0
  %384 = vmatprep.subr.mxu0 0.0
  %385 = vmatpush1.msra.mxu0 0.0
  %386 = vmatprep.subr.mxu0 0.0
  %387 = vmatpush1.msra.mxu0 0.0
  %388 = vmatprep.subr.mxu0 0.0
  %389 = vmatpush1.msra.mxu0 0.0
  %390 = vmatprep.subr.mxu0 0.0
  %391 = vmatpush1.msra.mxu0 0.0
  %392 = vmatprep.mubr.f32.mxu0 0.0
  %393 = vmatmul.mubr.f32.gmra.mrb[0].mxu0 %v326
  %v394 = vpop.f32.mrb[0].mxu0
  %v395 = vadd.f32 %v323, %v394
  %v396 = vpop.f32.mrb[0].mxu0
  %397 = vdwg.mxu0
  %v398 = vmax.f32 %v395, 0.0
  %v399 = vld [vmem:[%s9] sm:$0xff]
  %v400 = vld [vmem:[%s9 + $0x8] sm:$0xff]
  %v401 = vld [vmem:[%s9 + $0x10] sm:$0xff]
  %v402 = vld [vmem:[%s9 + $0x18] sm:$0xff]
  %v403 = vld [vmem:[%s9 + $0x20] sm:$0xff]
  %v404 = vld [vmem:[%s9 + $0x28] sm:$0xff]
  %v405 = vld [vmem:[%s9 + $0x30] sm:$0xff]
  %v406 = vld [vmem:[%s9 + $0x38] sm:$0xff]
  %v407 = vld [vmem:[%s9 + $0x40] sm:$0xff]
  %v408 = vld [vmem:[%s9 + $0x48] sm:$0xff]
  %v409 = vld [vmem:[%s9 + $0x50] sm:$0xff]
  %v410 = vld [vmem:[%s9 + $0x58] sm:$0xff]
  %v411 = vld [vmem:[%s9 + $0x60] sm:$0xff]
  %v412 = vld [vmem:[%s9 + $0x68] sm:$0xff]
  %v413 = vld [vmem:[%s9 + $0x70] sm:$0xff]
  %v414 = vld [vmem:[%s9 + $0x78] sm:$0xff]
  %v415 = vld [vmem:[%s10] sm:$0x1]
  %v417 = vlaneseq
  %v418 = vshrl.u32 %v417, 7
  %v419 = vsub.s32 0, %v418
  %v420 = vrot.slane %v415, %v419
  %422 = vmatprep.subr.mxu0 0.0
  %423 = vmatpush1.msra.mxu0 %v399
  %424 = vmatprep.subr.mxu0 0.0
  %425 = vmatpush1.msra.mxu0 %v400
  %426 = vmatprep.subr.mxu0 0.0
  %427 = vmatpush1.msra.mxu0 %v401
  %428 = vmatprep.subr.mxu0 0.0
  %429 = vmatpush1.msra.mxu0 %v402
  %430 = vmatprep.subr.mxu0 0.0
  %431 = vmatpush1.msra.mxu0 %v403
  %432 = vmatprep.subr.mxu0 0.0
  %433 = vmatpush1.msra.mxu0 %v404
  %434 = vmatprep.subr.mxu0 0.0
  %435 = vmatpush1.msra.mxu0 %v405
  %436 = vmatprep.subr.mxu0 0.0
  %437 = vmatpush1.msra.mxu0 %v406
  %438 = vmatprep.subr.mxu0 0.0
  %439 = vmatpush1.msra.mxu0 %v407
  %440 = vmatprep.subr.mxu0 0.0
  %441 = vmatpush1.msra.mxu0 %v408
  %442 = vmatprep.subr.mxu0 0.0
  %443 = vmatpush1.msra.mxu0 %v409
  %444 = vmatprep.subr.mxu0 0.0
  %445 = vmatpush1.msra.mxu0 %v410
  %446 = vmatprep.subr.mxu0 0.0
  %447 = vmatpush1.msra.mxu0 %v411
  %448 = vmatprep.subr.mxu0 0.0
  %449 = vmatpush1.msra.mxu0 %v412
  %450 = vmatprep.subr.mxu0 0.0
  %451 = vmatpush1.msra.mxu0 %v413
  %452 = vmatprep.subr.mxu0 0.0
  %453 = vmatpush1.msra.mxu0 %v414
  %454 = vmatprep.subr.mxu0 0.0
  %455 = vmatpush1.msra.mxu0 0.0
  %456 = vmatprep.subr.mxu0 0.0
  %457 = vmatpush1.msra.mxu0 0.0
  %458 = vmatprep.subr.mxu0 0.0
  %459 = vmatpush1.msra.mxu0 0.0
  %460 = vmatprep.subr.mxu0 0.0
  %461 = vmatpush1.msra.mxu0 0.0
  %462 = vmatprep.subr.mxu0 0.0
  %463 = vmatpush1.msra.mxu0 0.0
  %464 = vmatprep.subr.mxu0 0.0
  %465 = vmatpush1.msra.mxu0 0.0
  %466 = vmatprep.subr.mxu0 0.0
  %467 = vmatpush1.msra.mxu0 0.0
  %468 = vmatprep.subr.mxu0 0.0
  %469 = vmatpush1.msra.mxu0 0.0
  %470 = vmatprep.subr.mxu0 0.0
  %471 = vmatpush1.msra.mxu0 0.0
  %472 = vmatprep.subr.mxu0 0.0
  %473 = vmatpush1.msra.mxu0 0.0
  %474 = vmatprep.subr.mxu0 0.0
  %475 = vmatpush1.msra.mxu0 0.0
  %476 = vmatprep.subr.mxu0 0.0
  %477 = vmatpush1.msra.mxu0 0.0
  %478 = vmatprep.subr.mxu0 0.0
  %479 = vmatpush1.msra.mxu0 0.0
  %480 = vmatprep.subr.mxu0 0.0
  %481 = vmatpush1.msra.mxu0 0.0
  %482 = vmatprep.subr.mxu0 0.0
  %483 = vmatpush1.msra.mxu0 0.0
  %484 = vmatprep.subr.mxu0 0.0
  %485 = vmatpush1.msra.mxu0 0.0
  %486 = vmatprep.mubr.f32.mxu0 0.0
  %487 = vmatmul.mubr.f32.gmra.mrb[0].mxu0 %v398
  %v488 = vpop.f32.mrb[0].mxu0
  %v489 = vadd.f32 %v420, %v488
  %v490 = vpop.f32.mrb[0].mxu0
  %491 = vdwg.mxu0
  %492 = vst.msk [vmem:[%s11] sm:$0xff] %vm47, %v489
  // Predicated region
  $region46: #{autoencoder_forward.1} parent=0 // pred_check
    _
  $region47: #{autoencoder_forward.1} parent=0 // pred_check_branch
    %494 = sbr.rel (0) target = $region49
  $region48: #{autoencoder_forward.1} parent=0 // pred_region
    _
  $region49: #{autoencoder_forward.1} parent=0 // pred_fallthru
    _
  // Predicated region
  $region50: #{autoencoder_forward.1} parent=0 // pred_check
    _
  $region51: #{autoencoder_forward.1} parent=0 // pred_check_branch
    %496 = sbr.rel (0) target = $region53
  $region52: #{autoencoder_forward.1} parent=0 // pred_region
    _
  $region53: #{autoencoder_forward.1} parent=0 // pred_fallthru
    _

</llo_original>
